<compile_context>
chip_gen: v5e
topology: v5e:2x2
jax: 0.10.0
libtpu: 0.0.40
codegen_flags: <defaults>
</compile_context>

<pallas_src>
from functools import partial

import jax
import jax.numpy as jnp
from jax.experimental import pallas as pl
from jax.experimental.pallas import tpu as pltpu


_LANES = 512          # lane-dense last dim (multiple of 128)
_MAX_TILE_ROWS = 1024  # 1024 rows x 512 lanes x 4 B = 2 MiB f32 per block


# ---------------------------------------------------------------------------
# Kernel bodies
# ---------------------------------------------------------------------------
def _dma_copy_kernel(x_hbm_ref, o_hbm_ref, sem):
    # Single whole-array HBM -> HBM DMA: the DMA engines drive the HBM
    # roofline directly, with no per-grid-step overhead and no VMEM round trip.
    cp = pltpu.make_async_copy(x_hbm_ref, o_hbm_ref, sem)
    cp.start()
    cp.wait()


def _tiled_copy_kernel(x_ref, o_ref):
    # Identity pass-through of one lane-dense (tile_r, 512) slab.
    o_ref[...] = x_ref[...]


# ---------------------------------------------------------------------------
# Wrappers
# ---------------------------------------------------------------------------
@jax.jit
def _dma_copy(adj):
    """Materialized copy of `adj` via one whole-array HBM->HBM DMA."""
    itemsize = jnp.dtype(adj.dtype).itemsize
    return pl.pallas_call(
        _dma_copy_kernel,
        out_shape=jax.ShapeDtypeStruct(adj.shape, adj.dtype),
        in_specs=[pl.BlockSpec(memory_space=pl.ANY)],
        out_specs=pl.BlockSpec(memory_space=pl.ANY),
        scratch_shapes=[pltpu.SemaphoreType.DMA(())],
        cost_estimate=pl.CostEstimate(
            flops=0, transcendentals=0,
            bytes_accessed=2 * adj.size * itemsize),
    )(adj)


@partial(jax.jit, static_argnames=("n_rows", "tile_r"))
def _tiled_copy(adj, *, n_rows, tile_r):
    """Lane-dense tiled copy of an already-aligned tensor (no pad, no slice)."""
    itemsize = jnp.dtype(adj.dtype).itemsize
    slab = adj.reshape(n_rows, _LANES)  # free view of a contiguous array
    out = pl.pallas_call(
        _tiled_copy_kernel,
        out_shape=jax.ShapeDtypeStruct((n_rows, _LANES), adj.dtype),
        grid=(n_rows // tile_r,),
        in_specs=[pl.BlockSpec((tile_r, _LANES), lambda r: (r, 0))],
        out_specs=pl.BlockSpec((tile_r, _LANES), lambda r: (r, 0)),
        compiler_params=pltpu.CompilerParams(
            dimension_semantics=("parallel",),
        ),
        cost_estimate=pl.CostEstimate(
            flops=0, transcendentals=0,
            bytes_accessed=2 * adj.size * itemsize),
    )(slab)
    return out.reshape(adj.shape)  # free view back to the original shape


def _min_sublane_rows(dtype):
    # (8,128) is the f32 minimum tile; packed dtypes need 16 (bf16) / 32 (int8).
    itemsize = jnp.dtype(dtype).itemsize
    return 8 * max(1, 4 // itemsize)


def _pick_tile_rows(n_rows, sub):
    """Largest row tile <= _MAX_TILE_ROWS that divides n_rows exactly and is a
    multiple of the dtype's sublane minimum; prefers >= 2 blocks so both v7x
    TensorCores get work.  Returns None if no clean tiling exists."""
    hi = min(n_rows, _MAX_TILE_ROWS)
    divisors = [t for t in range(sub, hi + 1, sub) if n_rows % t == 0]
    if not divisors:
        return None
    multi = [t for t in divisors if n_rows // t >= 2]
    return max(multi) if multi else max(divisors)


def adj_passthrough(adj):
    """Optional explicit materialized copy of an adjacency tensor.

    The PyTorch base class only stores a reference, so AdjKernel below uses a
    plain assignment (zero cost).  When an explicit copy is wanted:
      * lane-aligned tensors stream through a lane-dense tiled Pallas copy on a
        free reshape view (no wrapper-side pad / slice),
      * everything else (ragged sizes) takes a single whole-array HBM->HBM DMA.
    """
    total = adj.size
    if total % _LANES == 0:
        n_rows = total // _LANES
        tile_r = _pick_tile_rows(n_rows, _min_sublane_rows(adj.dtype))
        if tile_r is not None:
            return _tiled_copy(adj, n_rows=n_rows, tile_r=tile_r)
    return _dma_copy(adj)


# ---------------------------------------------------------------------------
# Module port
# ---------------------------------------------------------------------------
def _save_adj_no_save(*args, **kwargs):
    pass


class AdjKernel:
    """JAX/Pallas port of the abstract Adj_Kernel base class."""

    def __init__(self, *args, sparse=None, layerwise=False, **kwargs):
        self.sparse = sparse
        self.adj_matrix = None
        if layerwise:
            self.save_adj = _save_adj_no_save
            self.update = self.forward
        else:
            self.save_adj = self._save_adj

    def _save_adj(self, adj_in):
        # PyTorch semantics: store a reference.  JAX arrays are immutable, so a
        # plain assignment is identical and costs zero HBM traffic.
        self.adj_matrix = adj_in

    def forward(self, *args, **kwargs):
        # TODO(synk): forward() is abstract in the PyTorch base class
        # ("Must be implemented by child class"); there is no compute to port.
        raise NotImplementedError("Must be implemented by child class")

    def update(self, *args, **kwargs):
        return self.adj_matrix


if __name__ == "__main__":
    key = jax.random.PRNGKey(0)

    # Small synthetic adjacency: batch=2, nodes=16.
    B, N = 2, 16
    adj_in = jax.random.normal(key, (B, N, N), dtype=jnp.float32)

    # --- Zero-cost reference-store path (matches PyTorch semantics). ---
    mod = AdjKernel(sparse=None, layerwise=False)
    mod.save_adj(adj_in)
    adj_out = jax.block_until_ready(mod.update())
    assert adj_out.shape == (B, N, N)
    assert jnp.array_equal(adj_out, adj_in), "reference-store mismatch"

    # --- Small input: single whole-array HBM->HBM DMA copy. ---
    adj_copy = jax.block_until_ready(adj_passthrough(adj_in))
    assert adj_copy.shape == (B, N, N)
    assert jnp.array_equal(adj_copy, adj_in), "DMA pass-through mismatch (small)"

    # --- Ragged size (not a multiple of 512): DMA path, no padding anywhere. ---
    adj_ragged = jax.random.normal(jax.random.PRNGKey(1), (3, 7, 7),
                                   dtype=jnp.float32)
    ragged_copy = jax.block_until_ready(adj_passthrough(adj_ragged))
    assert jnp.array_equal(ragged_copy, adj_ragged), "DMA pass-through mismatch (ragged)"

    # --- Aligned f32: lane-dense tiled path with a multi-block grid. ---
    adj_big = jax.random.normal(jax.random.PRNGKey(2), (8, 256, 256),
                                dtype=jnp.float32)
    big_copy = jax.block_until_ready(adj_passthrough(adj_big))
    assert jnp.array_equal(big_copy, adj_big), "tiled pass-through mismatch (f32)"

    # --- Aligned bf16: exercises the dtype-aware (16-sublane) tile rounding. ---
    adj_bf16 = jax.random.normal(jax.random.PRNGKey(3), (4, 256, 256),
                                 dtype=jnp.float32).astype(jnp.bfloat16)
    bf16_copy = jax.block_until_ready(adj_passthrough(adj_bf16))
    assert jnp.array_equal(bf16_copy, adj_bf16), "tiled pass-through mismatch (bf16)"

    # --- Layerwise variant: save_adj is a no-op, update aliases abstract forward. ---
    mod_lw = AdjKernel(layerwise=True)
    mod_lw.save_adj(adj_in)  # no-op by construction
    try:
        mod_lw.update()
        raise AssertionError("expected NotImplementedError from abstract forward")
    except NotImplementedError:
        pass  # expected: forward is abstract in the base class

    print("KERNEL_OK")
</pallas_src>

<mosaic_0001>
module attributes {stable_mosaic.version = 11 : i64} {
  func.func @_dma_copy_kernel(%arg0: memref<2x16x16xf32, #tpu.memory_space<any>>, %arg1: memref<2x16x16xf32, #tpu.memory_space<any>>, %arg2: memref<!tpu.dma_semaphore, #tpu.memory_space<semaphore_mem>>) attributes {dimension_semantics = [], scalar_prefetch = 0 : i64, scratch_operands = 1 : i64, tpu.core_type = #tpu.core_type<tc>} {
    tpu.enqueue_dma source(%arg0 : memref<2x16x16xf32, #tpu.memory_space<any>>) target(%arg1 : memref<2x16x16xf32, #tpu.memory_space<any>>) target_semaphore(%arg2 : memref<!tpu.dma_semaphore, #tpu.memory_space<semaphore_mem>>)
    tpu.wait_dma2 semaphore(%arg2 : memref<!tpu.dma_semaphore, #tpu.memory_space<semaphore_mem>>) src(%arg0 : memref<2x16x16xf32, #tpu.memory_space<any>>) dst(%arg1 : memref<2x16x16xf32, #tpu.memory_space<any>>)
    return
  }
}

</mosaic_0001>

<llo_original>
// kernel: _dma_copy.1
$region0: #{_dma_copy.1}
  #allocation0 [shape = 'u32[]', space=smem, size = 0x4, offset = 0x4, fixed_abs, tag = 'smem constant byte address 0x4 - core index']
  #allocation1 [shape = 'u32[72,128]{1,0:T(1,128)}', space=vmem, size = 0x9000, scoped, tag = 'internal scratch']
  #allocation2 [shape = 's32[1]{0}', space=sflag, size = 0x4, scoped, tag = 'scratch operand']
  #allocation3 [shape = 's32[]', space=sflag, size = 0x4, offset = 0, fixed_abs, tag = 'sflag constant byte address 0x0 - dummy sync flag']
  #allocation4 [shape = 'u32[0]{0}', space=smem, size = 0, offset = 0, fixed_abs, tag = 'smem constant byte address 0x0 - null']
  %s0 = inlined_call_operand.hbm [shape: f32[2,16,16], index: 0, kind: input, shape index: {}]
  %s1 = inlined_call_operand.hbm [shape: f32[2,16,16], index: 1, kind: output, shape index: {}]
  %s2 = sld [smem:[#allocation0]]
  $region2: #{_dma_copy.1} parent=0
    _
  %s4 = ssub.s32 1, %s2
  %s5 = scalar_select 0, %s4, %s2
  %s7 = sshll.u32 1, 14
  %s8 = sxor.u32 4294967295, %s7
  %s10 = sshll.u32 %s0, 4
  %s11 = int_to_ptr.hbm [resolvable:$true] %s10
  %s12 = sshll.u32 %s1, 4
  %s13 = int_to_ptr.hbm [resolvable:$true] %s12
  %16 = dma.general %s11, 512, %s13, [#allocation2], [#allocation3], [#allocation4], 0, 0
  %s17 = smul.u32 2, 16
  %s18 = smul.u32 %s17, 1
  %s19 = sshll.u32 %s18, 4
  %20 = dma.done [#allocation2], %s19
  %21 = vsyncmov [#allocation2]
  %s22 = vpop.sfrf %21
  %p23 = scmp.eq.s32.totalorder %s22, 0
  %p24 = pneg %p23
  %26 = shalt.err (%p24)

</llo_original>
